<compile_context>
chip_gen: v7x
topology: tpu7x:2x2x1
jax: 0.10.0
libtpu: 0.0.40
codegen_flags: <defaults>
</compile_context>

<pallas_src>
import math

import jax
import jax.numpy as jnp
from jax.experimental import pallas as pl
from jax.experimental.pallas import tpu as pltpu


_LANE = 128
_SUBLANE = 8
_VMEM_LIMIT_BYTES = 32 * 1024 * 1024  # scoped-VMEM limit; safe on v5e/v6e/v7x


def _target_block_bytes():
    """Per-generation HBM-streaming block size (per pipeline buffer)."""
    try:
        kind = jax.devices()[0].device_kind.lower()
    except Exception:
        kind = ""
    if "v7" in kind or "7x" in kind:
        return 4 << 20  # ~3.2 TB/s HBM; 4 MiB x 2 bufs x (in+out) = 16 MiB VMEM
    if "v6" in kind:
        return 2 << 20
    if "v5" in kind or "v4" in kind:
        return 2 << 20  # already near roofline at 1-2 MiB
    return 2 << 20


def _sd_scale_kernel(noise_ref, x_ref, o_ref):
    # noise_ref: VMEM float32 per-row scale, shape (b_blk, 1[, 1]).
    # x_ref/o_ref: VMEM tile of the current (batch rows, feature chunk).
    # Cast the scale once to the input dtype and multiply in that dtype
    # (matches the PyTorch reference; no f32 promotion of bf16 tiles).
    scale = noise_ref[...].astype(o_ref.dtype)
    o_ref[...] = x_ref[...] * scale


def _compiler_params(n_axes):
    return pltpu.CompilerParams(
        dimension_semantics=("parallel",) * n_axes,
        vmem_limit_bytes=_VMEM_LIMIT_BYTES,
    )


def stochastic_depth_pallas(x, p, mode, training, key, *, donate=False):
    """Pallas implementation of torchvision-style stochastic_depth.

    x: (B, ...) array (e.g. NCHW). Returns (out, noise) where noise is the
    per-row float32 scale actually applied (None in eval / p == 0).
    Set donate=True only if the caller can donate x's buffer.
    """
    if (not training) or p == 0.0:
        return x, None

    B = x.shape[0]
    F = math.prod(x.shape[1:])
    survival_rate = 1.0 - p

    # Tiny per-row (or per-batch) Bernoulli draw in plain JAX, kept in float32.
    if mode == "row":
        keep = jax.random.bernoulli(key, survival_rate, (B,))
    elif mode == "batch":
        keep = jnp.broadcast_to(jax.random.bernoulli(key, survival_rate, (1,)), (B,))
    else:
        raise ValueError(f"unknown mode: {mode}")

    noise = keep.astype(jnp.float32)
    if survival_rate > 0.0:
        noise = noise / jnp.float32(survival_rate)

    itemsize = jnp.dtype(x.dtype).itemsize
    target = _target_block_bytes()
    io_aliases = {1: 0} if donate else {}

    if F > 0 and F % _LANE == 0:
        # ---- Fast path: lane/sublane-dense (B, S, 128) blocks ----
        S = F // _LANE
        x3 = x.reshape(B, S, _LANE)
        noise3 = noise.reshape(B, 1, 1)

        max_sub = (target // itemsize) // _LANE
        max_sub = max(_SUBLANE, (max_sub // _SUBLANE) * _SUBLANE)
        if S <= max_sub:
            # Whole row fits in one feature block: batch rows per block.
            sub_blk = S
            row_bytes = max(1, F * itemsize)
            b_blk = max(1, min(B, target // row_bytes))
            # Keep >= min(4, B) grid steps for v7x's two TCs / pipelining.
            min_steps = min(4, B)
            if min_steps > 1:
                b_blk = min(b_blk, max(1, B // min_steps))
        else:
            sub_blk = max_sub
            b_blk = 1

        grid = (pl.cdiv(B, b_blk), pl.cdiv(S, sub_blk))
        out = pl.pallas_call(
            _sd_scale_kernel,
            out_shape=jax.ShapeDtypeStruct((B, S, _LANE), x.dtype),
            grid_spec=pltpu.PrefetchScalarGridSpec(
                num_scalar_prefetch=0,
                grid=grid,
                in_specs=[
                    pl.BlockSpec((b_blk, 1, 1), lambda b, s: (b, 0, 0)),       # noise
                    pl.BlockSpec((b_blk, sub_blk, _LANE), lambda b, s: (b, s, 0)),
                ],
                out_specs=pl.BlockSpec((b_blk, sub_blk, _LANE), lambda b, s: (b, s, 0)),
            ),
            compiler_params=_compiler_params(2),
            input_output_aliases=io_aliases,
        )(noise3, x3)
        return out.reshape(x.shape), noise

    # ---- Fallback: F not a multiple of 128 ----
    # 2D (B, F) blocks: row_blk rows (full B when B < 8, else 8) x a lane
    # block that is a multiple of 128 sized to the byte target (ragged edge
    # block is masked).  Bounded VMEM regardless of F.
    x2 = x.reshape(B, F)
    noise2 = noise.reshape(B, 1)

    row_blk = min(B, _SUBLANE)  # either full B (< 8) or a multiple of 8
    lane_budget = max(_LANE, target // max(1, row_blk * itemsize))
    if lane_budget >= F:
        lane_blk = F  # full feature dim (allowed even if not 128-aligned)
    else:
        lane_blk = max(_LANE, (lane_budget // _LANE) * _LANE)
    # TODO(synk): for huge-B / tiny-non-aligned-F shapes, also grow row_blk in
    # multiples of 8 to keep blocks near the DMA sweet spot.

    grid = (pl.cdiv(B, row_blk), pl.cdiv(F, lane_blk))
    out = pl.pallas_call(
        _sd_scale_kernel,
        out_shape=jax.ShapeDtypeStruct((B, F), x.dtype),
        grid_spec=pltpu.PrefetchScalarGridSpec(
            num_scalar_prefetch=0,
            grid=grid,
            in_specs=[
                pl.BlockSpec((row_blk, 1), lambda r, l: (r, 0)),               # noise
                pl.BlockSpec((row_blk, lane_blk), lambda r, l: (r, l)),
            ],
            out_specs=pl.BlockSpec((row_blk, lane_blk), lambda r, l: (r, l)),
        ),
        compiler_params=_compiler_params(2),
        input_output_aliases=io_aliases,
    )(noise2, x2)
    return out.reshape(x.shape), noise


class StochasticDepthPallas:
    """Mirror of the PyTorch StochasticDepth module (no learned params)."""

    def __init__(self, p=0.5, mode="row"):
        self.p = p
        self.mode = mode
        self.training = True

    def __call__(self, x, key):
        return stochastic_depth_pallas(x, self.p, self.mode, self.training, key)


def _reference(x, noise):
    shape = (x.shape[0],) + (1,) * (x.ndim - 1)
    return x * noise.reshape(shape).astype(x.dtype)


if __name__ == "__main__":
    key = jax.random.PRNGKey(0)
    k_x, k_noise = jax.random.split(key)

    B, C, H, W = 2, 4, 16, 16
    x = jax.random.normal(k_x, (B, C, H, W), dtype=jnp.float32)

    # Row mode (aligned fast path).
    module = StochasticDepthPallas(p=0.5, mode="row")
    out, noise = module(x, k_noise)
    out = jax.block_until_ready(out)
    assert out.shape == x.shape and out.dtype == x.dtype
    assert jnp.allclose(out, _reference(x, noise), atol=1e-6, rtol=1e-6)

    # Batch mode.
    module_b = StochasticDepthPallas(p=0.5, mode="batch")
    out_b, noise_b = module_b(x, k_noise)
    out_b = jax.block_until_ready(out_b)
    assert jnp.allclose(out_b, _reference(x, noise_b), atol=1e-6, rtol=1e-6)

    # Larger batch exercises multi-row blocks (b_blk > 1).
    x_big = jax.random.normal(k_x, (16, C, H, W), dtype=jnp.float32)
    out_big, noise_big = module(x_big, k_noise)
    out_big = jax.block_until_ready(out_big)
    assert jnp.allclose(out_big, _reference(x_big, noise_big), atol=1e-6, rtol=1e-6)

    # bf16 input: multiply happens in bf16 (scale cast once).
    x_bf16 = x.astype(jnp.bfloat16)
    out_bf16, noise_bf16 = module(x_bf16, k_noise)
    out_bf16 = jax.block_until_ready(out_bf16)
    assert out_bf16.dtype == jnp.bfloat16
    assert jnp.allclose(out_bf16.astype(jnp.float32),
                        _reference(x_bf16, noise_bf16).astype(jnp.float32),
                        atol=1e-6, rtol=1e-6)

    # Non-128-aligned feature count exercises the bounded-VMEM fallback path.
    x_odd = jax.random.normal(k_x, (B, 3, 7, 7), dtype=jnp.float32)
    out_odd, noise_odd = module(x_odd, k_noise)
    out_odd = jax.block_until_ready(out_odd)
    assert jnp.allclose(out_odd, _reference(x_odd, noise_odd), atol=1e-6, rtol=1e-6)

    # Eval mode / p == 0.0 pass-through behaves like the PyTorch module.
    module.training = False
    out_eval, _ = module(x, k_noise)
    assert jnp.array_equal(out_eval, x)

    print("KERNEL_OK")
</pallas_src>

<mosaic_0001>
module attributes {stable_mosaic.version = 11 : i64} {
  func.func @_sd_scale_kernel(%arg0: i32, %arg1: i32, %arg2: memref<1x1x1xf32, #tpu.memory_space<vmem>>, %arg3: memref<1x8x128xf32, #tpu.memory_space<vmem>>, %arg4: memref<1x8x128xf32, #tpu.memory_space<vmem>>) attributes {dimension_semantics = [#tpu.dimension_semantics<parallel>, #tpu.dimension_semantics<parallel>], iteration_bounds = array<i64: 2, 1>, scalar_prefetch = 0 : i64, scratch_operands = 0 : i64, tpu.core_type = #tpu.core_type<tc>, window_params = [{transform_indices = @transform_0, window_bounds = array<i64: 1, 1, 1>}, {transform_indices = @transform_1, window_bounds = array<i64: 1, 8, 128>}, {transform_indices = @transform_2, window_bounds = array<i64: 1, 8, 128>}]} {
    %c0 = arith.constant 0 : index
    %c0_0 = arith.constant 0 : index
    %c0_1 = arith.constant 0 : index
    %0 = vector.load %arg2[%c0, %c0_0, %c0_1] : memref<1x1x1xf32, #tpu.memory_space<vmem>>, vector<1x1x1xf32>
    %c0_2 = arith.constant 0 : index
    %c0_3 = arith.constant 0 : index
    %c0_4 = arith.constant 0 : index
    %1 = vector.load %arg3[%c0_2, %c0_3, %c0_4] : memref<1x8x128xf32, #tpu.memory_space<vmem>>, vector<1x8x128xf32>
    %2 = vector.broadcast %0 : vector<1x1x1xf32> to vector<1x8x128xf32>
    %3 = arith.mulf %1, %2 : vector<1x8x128xf32>
    %c0_5 = arith.constant 0 : index
    %c0_6 = arith.constant 0 : index
    %c0_7 = arith.constant 0 : index
    %4 = vector.load %arg4[%c0_5, %c0_6, %c0_7] : memref<1x8x128xf32, #tpu.memory_space<vmem>>, vector<1x8x128xf32>
    tpu.vector_store %arg4[%c0_5, %c0_6, %c0_7], %3 {strides = array<i32>} : memref<1x8x128xf32, #tpu.memory_space<vmem>>, vector<1x8x128xf32>,
    return
  }
  func.func @transform_0(%arg0: i32, %arg1: i32) -> (i32, i32, i32) {
    %c0_i32 = arith.constant 0 : i32
    %c0_i32_0 = arith.constant 0 : i32
    %c0_i32_1 = arith.constant 0 : i32
    return %arg0, %c0_i32, %c0_i32_0 : i32, i32, i32
  }
  func.func @transform_1(%arg0: i32, %arg1: i32) -> (i32, i32, i32) {
    %c0_i32 = arith.constant 0 : i32
    %c0_i32_0 = arith.constant 0 : i32
    return %arg0, %arg1, %c0_i32 : i32, i32, i32
  }
  func.func @transform_2(%arg0: i32, %arg1: i32) -> (i32, i32, i32) {
    %c0_i32 = arith.constant 0 : i32
    %c0_i32_0 = arith.constant 0 : i32
    return %arg0, %arg1, %c0_i32 : i32, i32, i32
  }
}

</mosaic_0001>

<llo_original>
// kernel: tpu_custom_call.1
$region0: #{tpu_custom_call.1}
  #allocation0 [shape = 'u32[]', space=smem, size = 0x4, offset = 0x4, fixed_abs, tag = 'smem constant byte address 0x4 - core index']
  #allocation1 [shape = 'u32[144,128]{1,0:T(1,128)}', space=vmem, size = 0x12000, scoped, tag = 'internal scratch']
  %s0 = inlined_call_operand.vmem [shape: f32[2,1,1], index: 0, kind: input, shape index: {}]
  %s1 = inlined_call_operand.hbm [shape: f32[2,8,128], index: 1, kind: input, shape index: {}]
  %s2 = inlined_call_operand.hbm [shape: f32[2,8,128], index: 2, kind: output, shape index: {}]
  %s3 = sld [smem:[#allocation0]]
  $region45: #{tpu_custom_call.1} parent=0
    _
  %s5 = ssub.s32 1, %s3
  %s6 = scalar_select 0, %s5, %s3
  $region1: #{tpu_custom_call.1} parent=0
    #allocation2 [shape = 'u8[8192]{0}', space=vmem, size = 0x2000, scoped, tag = 'input window, operand 1']
    #allocation3 [shape = 's32[2]{0}', space=sflag, size = 0x8, scoped, tag = 'scoped memory for tpu_custom_call.1']
    #allocation4 [shape = 's32[2]{0}', space=sflag, size = 0x8, scoped, tag = 'scoped memory for tpu_custom_call.1']
    #allocation5 [shape = 'u8[8192]{0}', space=vmem, size = 0x2000, scoped, tag = 'output window, operand 0']
    %7 = vsyncpa [#allocation3], 0
    %s8 = scalar_lea.sflag [#allocation3], 1
    %9 = vsyncpa %s8, 0
    %10 = vsyncpa [#allocation4], 0
    %s11 = scalar_lea.sflag [#allocation4], 1
    %12 = vsyncpa %s11, 0
    loop: start=0, step=1, limit=4
    $region2: #{tpu_custom_call.1} parent=1 // loop_pre_header
      _
    $region3: #{tpu_custom_call.1} parent=1 // loop_header
      %s14 = sphi 0, %s18
      %p15 = scmp.ge.s32.totalorder %s14, 4
      %s21 = sphi 0, %s33
      %s22 = sphi 0, %s29
      %s23 = sphi 0, %s21
      %s24 = sphi 0, %s22
      %s25 = sphi 0, %s23
      %s26 = sphi 0, %s24
      %s36 = sphi 0, %s38
      %s39 = sphi 0, %s36
      %s40 = sphi 0, %s39
      %s56 = sphi 0, %s40
      %s64 = sphi 0, %s66
      %s67 = sphi 0, %s64
      %s68 = sphi 0, %s67
      %s84 = sphi 0, %s68
      %s92 = sphi 0, %s94
      %s95 = sphi 0, %s92
      %s96 = sphi 0, %s95
      %s112 = sphi 0, %s96
    $region4: #{tpu_custom_call.1} parent=1 // loop_header_branch
      %17 = sbr.rel (%p15) target = $region8
    $region5: #{tpu_custom_call.1} parent=1 // loop_body
      %s19 = ssub.s32 %s14, 1
      %s20 = ssub.s32 %s14, 2
      %s27 = sadd.s32 1, %s22
      %p28 = scmp.ge.s32.totalorder %s27, 1
      %s29 = scalar_select %p28, 0, %s27
      %s30 = sadd.s32 1, %s21
      %s31 = scalar_select %p28, %s30, %s21
      %p32 = scmp.ge.s32.totalorder %s31, 2
      %s33 = scalar_select %p32, 0, %s31
      %s34 = ssub.s32 %s21, %s33
      %p35 = scmp.eq.s32.totalorder %s34, 0
      %s37 = sadd.s32 %s36, 1
      %s38 = scalar_select %p35, %s36, %s37
      %p41 = pneg %p35
      %p42 = scmp.eq.s32.totalorder %s14, 1
      %p43 = por %p41, %p42
      %p44 = scmp.ne.s32.totalorder %s36, %s39
      %p45 = scmp.eq.s32.totalorder %s14, 0
      %p46 = por %p44, %p45
      %p47 = scmp.ne.s32.totalorder %s36, %s39
      %p48 = scmp.eq.s32.totalorder %s19, 1
      %p49 = por %p47, %p48
      %p50 = scmp.ne.s32.totalorder %s39, %s40
      %p51 = scmp.eq.s32.totalorder %s19, 0
      %p52 = por %p50, %p51
      %p53 = scmp.ne.s32.totalorder %s39, %s40
      %p54 = scmp.eq.s32.totalorder %s20, 1
      %p55 = por %p53, %p54
      %p57 = scmp.ne.s32.totalorder %s40, %s56
      %p58 = scmp.eq.s32.totalorder %s20, 0
      %p59 = por %p57, %p58
      %s60 = ssub.s32 %s21, %s33
      %s61 = ssub.s32 %s22, %s29
      %s62 = sor.u32 %s60, %s61
      %p63 = scmp.eq.s32.totalorder %s62, 0
      %s65 = sadd.s32 %s64, 1
      %s66 = scalar_select %p63, %s64, %s65
      %p69 = pneg %p63
      %p70 = scmp.eq.s32.totalorder %s14, 1
      %p71 = por %p69, %p70
      %p72 = scmp.ne.s32.totalorder %s64, %s67
      %p73 = scmp.eq.s32.totalorder %s14, 0
      %p74 = por %p72, %p73
      %p75 = scmp.ne.s32.totalorder %s64, %s67
      %p76 = scmp.eq.s32.totalorder %s19, 1
      %p77 = por %p75, %p76
      %p78 = scmp.ne.s32.totalorder %s67, %s68
      %p79 = scmp.eq.s32.totalorder %s19, 0
      %p80 = por %p78, %p79
      %p81 = scmp.ne.s32.totalorder %s67, %s68
      %p82 = scmp.eq.s32.totalorder %s20, 1
      %p83 = por %p81, %p82
      %p85 = scmp.ne.s32.totalorder %s68, %s84
      %p86 = scmp.eq.s32.totalorder %s20, 0
      %p87 = por %p85, %p86
      %s88 = ssub.s32 %s21, %s33
      %s89 = ssub.s32 %s22, %s29
      %s90 = sor.u32 %s88, %s89
      %p91 = scmp.eq.s32.totalorder %s90, 0
      %s93 = sadd.s32 %s92, 1
      %s94 = scalar_select %p91, %s92, %s93
      %p97 = pneg %p91
      %p98 = scmp.eq.s32.totalorder %s14, 1
      %p99 = por %p97, %p98
      %p100 = scmp.ne.s32.totalorder %s92, %s95
      %p101 = scmp.eq.s32.totalorder %s14, 0
      %p102 = por %p100, %p101
      %p103 = scmp.ne.s32.totalorder %s92, %s95
      %p104 = scmp.eq.s32.totalorder %s19, 1
      %p105 = por %p103, %p104
      %p106 = scmp.ne.s32.totalorder %s95, %s96
      %p107 = scmp.eq.s32.totalorder %s19, 0
      %p108 = por %p106, %p107
      %p109 = scmp.ne.s32.totalorder %s95, %s96
      %p110 = scmp.eq.s32.totalorder %s20, 1
      %p111 = por %p109, %p110
      %p113 = scmp.ne.s32.totalorder %s96, %s112
      %p114 = scmp.eq.s32.totalorder %s20, 0
      %p115 = por %p113, %p114
      %p116 = scmp.le.s32.totalorder 1, %s14
      %p117 = scmp.lt.s32.totalorder %s14, 3
      %p118 = pnand %p116, %p117
      %p119 = pneg %p118
      // Predicated region
      $region9: #{tpu_custom_call.1} parent=5 // pred_check
        _
      $region10: #{tpu_custom_call.1} parent=5 // pred_check_branch
        %121 = sbr.rel (%p118) target = $region12
      $region11: #{tpu_custom_call.1} parent=5 // pred_region
        %s122 = ssub.s32 %s14, 1
      $region12: #{tpu_custom_call.1} parent=5 // pred_fallthru
        _
      %p123 = scmp.lt.s32.totalorder %s14, 2
      // Predicated region
      $region13: #{tpu_custom_call.1} parent=5 // pred_check
        %p124 = pneg %p123
      $region14: #{tpu_custom_call.1} parent=5 // pred_check_branch
        %126 = sbr.rel (%p124) target = $region16
      $region15: #{tpu_custom_call.1} parent=5 // pred_region
        // Predicated region
        $region17: #{tpu_custom_call.1} parent=15 // pred_check
          %p127 = pneg %p46
        $region18: #{tpu_custom_call.1} parent=15 // pred_check_branch
          %129 = sbr.rel (%p127) target = $region20
        $region19: #{tpu_custom_call.1} parent=15 // pred_region
          %p130 = scmp.lt.s32.totalorder %s21, 1
          %s131 = scalar_select %p130, %s21, 1
          %s132 = scalar_lea.vmem %s0, %s131
        $region20: #{tpu_custom_call.1} parent=15 // pred_fallthru
          _
        // Predicated region
        $region21: #{tpu_custom_call.1} parent=15 // pred_check
          %p133 = pneg %p74
        $region22: #{tpu_custom_call.1} parent=15 // pred_check_branch
          %135 = sbr.rel (%p133) target = $region24
        $region23: #{tpu_custom_call.1} parent=15 // pred_region
          %s136 = sand.u32 %s64, 1
          %s137 = scalar_lea.sflag [#allocation3], %s136
          %s138 = sand.u32 %s64, 1
          %s139 = smul.addr %s138, 8
          %s140 = scalar_lea.vmem [#allocation2], %s139
          %s142 = ssub.s32 128, 128
          %143 = vsyncadd %s137, %s142
          %s144 = sadd.s32 %s22, %s21
          %s145 = smul.addr %s144, 128
          %s146 = scalar_lea.hbm %s1, %s145
          %s148 = sshll.u32 %s140, 4
          %s149 = int_to_ptr.vmem [resolvable:$true] %s148
          %151 = dma.hbm_to_vmem [thread:$0]  %s146, 128, %s149, %s137
        $region24: #{tpu_custom_call.1} parent=15 // pred_fallthru
          _
      $region16: #{tpu_custom_call.1} parent=5 // pred_fallthru
        _
      %p152 = scmp.le.s32.totalorder 1, %s14
      %p153 = scmp.lt.s32.totalorder %s14, 3
      %p154 = pnand %p152, %p153
      %p155 = pneg %p154
      // Predicated region
      $region25: #{tpu_custom_call.1} parent=5 // pred_check
        _
      $region26: #{tpu_custom_call.1} parent=5 // pred_check_branch
        %157 = sbr.rel (%p154) target = $region28
      $region27: #{tpu_custom_call.1} parent=5 // pred_region
        %s158 = ssub.s32 %s14, 1
        %s159 = sand.u32 %s67, 1
        %s160 = scalar_lea.sflag [#allocation3], %s159
        %s161 = sand.u32 %s67, 1
        %s162 = smul.addr %s161, 8
        %s163 = scalar_lea.vmem [#allocation2], %s162
        // Predicated region
        $region29: #{tpu_custom_call.1} parent=27 // pred_check
          %p164 = pneg %p80
        $region30: #{tpu_custom_call.1} parent=27 // pred_check_branch
          %166 = sbr.rel (%p164) target = $region32
        $region31: #{tpu_custom_call.1} parent=27 // pred_region
          %167 = dma.done %s160, 128
        $region32: #{tpu_custom_call.1} parent=27 // pred_fallthru
          _
        %p168 = scmp.lt.s32.totalorder %s23, 1
        %s169 = scalar_select %p168, %s23, 1
        %s170 = scalar_lea.vmem %s0, %s169
        %p171 = pneg %p52
        %p172 = pneg %p49
        %s173 = sand.u32 %s67, 1
        %s174 = scalar_lea.sflag [#allocation3], %s173
        %s175 = sand.u32 %s67, 1
        %s176 = smul.addr %s175, 8
        %s177 = scalar_lea.vmem [#allocation2], %s176
        %p178 = pneg %p80
        %p179 = pneg %p77
        %p180 = pneg %p108
        %p181 = pneg %p105
        %s182 = sand.u32 %s95, 1
        %s183 = scalar_lea.sflag [#allocation4], %s182
        %s184 = sand.u32 %s95, 1
        %s185 = smul.addr %s184, 8
        %s186 = scalar_lea.vmem [#allocation5], %s185
        %p187 = scmp.lt.s32.totalorder %s23, 1
        %s188 = scalar_select %p187, %s23, 1
        %s189 = scalar_lea.vmem %s0, %s188
        %v190 = vld [vmem:[%s189] sm:$0x1]
        %v191 = vld [vmem:[%s163] sm:$0xff]
        %v193 = vlaneseq
        %v194 = vshrl.u32 %v193, 7
        %v195 = vsub.s32 0, %v194
        %v196 = vrot.slane %v190, %v195
        %197 = vset.pattern.permute.xlu0 0
        %198 = vperm.xlu0 %197, %v196
        %v199 = vpop.permute.xlu0 %198
        %v201 = vmul.f32 %v191, %v199
        %202 = vst [vmem:[%s186] sm:$0xff] %v201
        %s203 = sand.u32 %s95, 1
        %s204 = scalar_lea.sflag [#allocation4], %s203
        %s205 = sand.u32 %s95, 1
        %s206 = smul.addr %s205, 8
        %s207 = scalar_lea.vmem [#allocation5], %s206
        // Predicated region
        $region33: #{tpu_custom_call.1} parent=27 // pred_check
          %p208 = pneg %p105
        $region34: #{tpu_custom_call.1} parent=27 // pred_check_branch
          %210 = sbr.rel (%p208) target = $region36
        $region35: #{tpu_custom_call.1} parent=27 // pred_region
          %s212 = ssub.s32 128, 128
          %213 = vsyncadd %s204, %s212
          %s214 = sadd.s32 %s24, %s23
          %s215 = smul.addr %s214, 128
          %s216 = scalar_lea.hbm %s2, %s215
          %s218 = sshll.u32 %s207, 4
          %s219 = int_to_ptr.vmem [resolvable:$true] %s218
          %221 = dma.vmem_to_hbm [thread:$0]  %s219, 128, %s216, %s204
        $region36: #{tpu_custom_call.1} parent=27 // pred_fallthru
          _
      $region28: #{tpu_custom_call.1} parent=5 // pred_fallthru
        _
      %p222 = scmp.le.s32.totalorder 2, %s14
      // Predicated region
      $region37: #{tpu_custom_call.1} parent=5 // pred_check
        %p223 = pneg %p222
      $region38: #{tpu_custom_call.1} parent=5 // pred_check_branch
        %225 = sbr.rel (%p223) target = $region40
      $region39: #{tpu_custom_call.1} parent=5 // pred_region
        %s226 = ssub.s32 %s14, 2
        // Predicated region
        $region41: #{tpu_custom_call.1} parent=39 // pred_check
          %p227 = pneg %p111
        $region42: #{tpu_custom_call.1} parent=39 // pred_check_branch
          %229 = sbr.rel (%p227) target = $region44
        $region43: #{tpu_custom_call.1} parent=39 // pred_region
          %s230 = sand.u32 %s96, 1
          %s231 = scalar_lea.sflag [#allocation4], %s230
          %s232 = sand.u32 %s96, 1
          %s233 = smul.addr %s232, 8
          %s234 = scalar_lea.vmem [#allocation5], %s233
          %235 = dma.done %s231, 128
        $region44: #{tpu_custom_call.1} parent=39 // pred_fallthru
          _
      $region40: #{tpu_custom_call.1} parent=5 // pred_fallthru
        _
    $region6: #{tpu_custom_call.1} parent=1 // loop_footer
      %s18 = sadd.s32 1, %s14
    $region7: #{tpu_custom_call.1} parent=1 // loop_footer_branch
      %13 = sbr.rel target = $region3
    $region8: #{tpu_custom_call.1} parent=1 // loop_exit
      _
    %236 = vsyncpa [#allocation3], 1
    %s237 = scalar_lea.sflag [#allocation3], 1
    %238 = vsyncpa %s237, 1
    %239 = vsyncpa [#allocation4], 1
    %s240 = scalar_lea.sflag [#allocation4], 1
    %241 = vsyncpa %s240, 1

</llo_original>
